<compile_context>
chip_gen: v5e
topology: v5e:2x2
jax: 0.10.0
libtpu: 0.0.40
codegen_flags: <defaults>
</compile_context>

<pallas_src>
import functools

import jax
import jax.numpy as jnp
from jax.experimental import pallas as pl
from jax.experimental.pallas import tpu as pltpu


def _round_up(x, m):
    return ((x + m - 1) // m) * m


def _apply_act(y, activation):
    if activation == "tanh":
        return jnp.tanh(y)          # EUP slot: overlaps under the MXU
    if activation == "relu":
        return jnp.maximum(y, 0.0)  # VPU slot
    if activation == "sigmoid":
        return jax.nn.sigmoid(y)    # EUP slot
    raise ValueError(f"unknown activation: {activation}")


# Conservative budgets: stay well under v7x's 64 MiB physical VMEM (smallest
# of the three generations), leaving headroom for double-buffering and
# compiler scratch.
_FUSED_VMEM_BUDGET = 48 * 1024 * 1024
_VMEM_LIMIT_CAP = 64 * 1024 * 1024


def _clamp_vmem_limit(est_bytes):
    return int(min(_VMEM_LIMIT_CAP, max(32 * 1024 * 1024, 2 * est_bytes)))


# ---------------------------------------------------------------------------
# Fused whole-MLP kernel (weights resident in VMEM, activations never hit HBM)
# ---------------------------------------------------------------------------

def _mlp_fused_kernel(*refs, activation, n_layers):
    x_ref = refs[0]
    w_refs = refs[1:1 + n_layers]
    b_refs = refs[1 + n_layers:1 + 2 * n_layers]
    o_ref = refs[1 + 2 * n_layers]

    h = x_ref[...].astype(jnp.float32)
    for l in range(n_layers):
        # MXU matmul with f32 accumulation; bias + activation fused (VPU/EUP
        # work overlaps under the MXU, so it is effectively free).
        y = jnp.dot(h, w_refs[l][...], preferred_element_type=jnp.float32)
        y = y + b_refs[l][...]          # (1, N) broadcast over the batch tile
        h = _apply_act(y, activation)
    o_ref[...] = h.astype(o_ref.dtype)


def _fused_vmem_estimate(block_b, params):
    d_in = params[0][0].shape[0]
    d_out_last = params[-1][0].shape[1]
    d_max = max(w.shape[1] for w, _ in params)
    est = 2 * 4 * block_b * (d_in + d_out_last)      # x / out tiles (double-buffered)
    est += 2 * 4 * block_b * d_max                   # live intermediate activation
    for w, _ in params:
        est += 2 * 4 * (w.shape[0] * w.shape[1] + w.shape[1])   # W + bias
    return est


def mlp_forward_fused(x, params, activation="tanh", *, max_block_b=256):
    B, D_in = x.shape
    n_layers = len(params)
    D_out = params[-1][0].shape[1]

    # Full batch in one tile if small; otherwise 256-row tiles (multiple of 8)
    # so the "parallel" batch axis has >= 2 grid steps for large batches.
    block_b = B if B <= max_block_b else max_block_b
    grid = (pl.cdiv(B, block_b),)

    in_specs = [pl.BlockSpec((block_b, D_in), lambda i: (i, 0))]      # x tile
    for w, _ in params:
        din, dout = w.shape
        in_specs.append(pl.BlockSpec((din, dout), lambda i: (0, 0)))  # resident W
    for w, _ in params:
        dout = w.shape[1]
        in_specs.append(pl.BlockSpec((1, dout), lambda i: (0, 0)))    # resident bias

    args = [x] + [w for w, _ in params] + [b.reshape(1, -1) for _, b in params]

    kernel = functools.partial(
        _mlp_fused_kernel, activation=activation, n_layers=n_layers)

    return pl.pallas_call(
        kernel,
        out_shape=jax.ShapeDtypeStruct((B, D_out), x.dtype),
        grid_spec=pltpu.PrefetchScalarGridSpec(
            num_scalar_prefetch=0,
            grid=grid,
            in_specs=in_specs,
            out_specs=pl.BlockSpec((block_b, D_out), lambda i: (i, 0)),
        ),
        compiler_params=pltpu.CompilerParams(
            dimension_semantics=("parallel",),
            vmem_limit_bytes=_clamp_vmem_limit(
                _fused_vmem_estimate(block_b, params)),
        ),
    )(*args)


# ---------------------------------------------------------------------------
# Fallback: per-layer M/N/K-tiled Linear + activation (for large layers)
# ---------------------------------------------------------------------------

def _linear_act_tiled_kernel(x_ref, w_ref, b_ref, o_ref, acc_ref, *, activation):
    k = pl.program_id(2)

    @pl.when(k == 0)
    def _():
        acc_ref[...] = jnp.zeros_like(acc_ref)

    acc_ref[...] += jnp.dot(x_ref[...], w_ref[...],
                            preferred_element_type=jnp.float32)

    @pl.when(k == pl.num_programs(2) - 1)
    def _():
        # Bias add + activation folded into the final writeback only.
        o_ref[...] = _apply_act(
            acc_ref[...] + b_ref[...], activation).astype(o_ref.dtype)


def linear_act_tiled(x, w, b, activation="tanh", *, tm=256, tn=256, tk=512):
    B, D_in = x.shape
    D_in_w, D_out = w.shape
    assert D_in == D_in_w

    # Clamp tiles to the (padded) problem; keep (8, 128) alignment.
    tm = min(tm, _round_up(B, 8))
    tn = min(tn, _round_up(D_out, 128))
    tk = min(tk, _round_up(D_in, 128))

    Bp = _round_up(B, tm)
    Kp = _round_up(D_in, tk)
    Np = _round_up(D_out, tn)

    # Zero-pad to tile multiples (zeros contribute nothing to the matmul);
    # padded rows/cols of the output are sliced off below.
    xp = x if (Bp == B and Kp == D_in) else jnp.pad(
        x, ((0, Bp - B), (0, Kp - D_in)))
    wp = w if (Kp == D_in and Np == D_out) else jnp.pad(
        w, ((0, Kp - D_in), (0, Np - D_out)))
    bp = (b if Np == D_out else jnp.pad(b, (0, Np - D_out))).reshape(1, Np)

    grid = (Bp // tm, Np // tn, Kp // tk)
    kernel = functools.partial(_linear_act_tiled_kernel, activation=activation)

    est = 4 * (2 * (tm * tk + tk * tn + tm * tn + tn) + tm * tn)

    out = pl.pallas_call(
        kernel,
        out_shape=jax.ShapeDtypeStruct((Bp, Np), x.dtype),
        grid_spec=pltpu.PrefetchScalarGridSpec(
            num_scalar_prefetch=0,
            grid=grid,
            in_specs=[
                pl.BlockSpec((tm, tk), lambda i, j, k: (i, k)),   # x tile
                pl.BlockSpec((tk, tn), lambda i, j, k: (k, j)),   # W tile
                pl.BlockSpec((1, tn), lambda i, j, k: (0, j)),    # bias tile
            ],
            out_specs=pl.BlockSpec((tm, tn), lambda i, j, k: (i, j)),
            scratch_shapes=[pltpu.VMEM((tm, tn), jnp.float32)],
        ),
        compiler_params=pltpu.CompilerParams(
            dimension_semantics=("parallel", "parallel", "arbitrary"),
            vmem_limit_bytes=_clamp_vmem_limit(est),
        ),
    )(xp, wp, bp)

    if Bp != B or Np != D_out:
        out = out[:B, :D_out]
    return out


# ---------------------------------------------------------------------------
# Dispatcher + module mirror
# ---------------------------------------------------------------------------

def mlp_forward(x, params, activation="tanh", *, force_tiled=False,
                max_block_b=256):
    B = x.shape[0]
    block_b = B if B <= max_block_b else max_block_b
    if (not force_tiled
            and _fused_vmem_estimate(block_b, params) <= _FUSED_VMEM_BUDGET):
        return mlp_forward_fused(x, params, activation,
                                 max_block_b=max_block_b)
    # Layers too large to keep fully VMEM-resident: per-layer tiled matmuls.
    for w, b in params:
        x = linear_act_tiled(x, w, b, activation)
    return x


class MLPPallas:
    """Mirror of the PyTorch MLP module (forward pass only)."""

    def __init__(self, input_dim, hidden_dims=(128, 128), activation="tanh",
                 key=jax.random.PRNGKey(0)):
        self.activation = activation
        self.out_dim = hidden_dims[-1]
        self.params = []
        last_dim = input_dim
        for nh in hidden_dims:
            key, wk, bk = jax.random.split(key, 3)
            # nn.Linear-style init: U(-1/sqrt(fan_in), 1/sqrt(fan_in)).
            bound = 1.0 / (last_dim ** 0.5)
            w = jax.random.uniform(wk, (last_dim, nh), jnp.float32, -bound, bound)
            b = jax.random.uniform(bk, (nh,), jnp.float32, -bound, bound)
            self.params.append((w, b))
            last_dim = nh

    def __call__(self, x):
        return mlp_forward(x, self.params, self.activation)


def _reference_forward(x, params, activation):
    act = {"tanh": jnp.tanh,
           "relu": lambda v: jnp.maximum(v, 0.0),
           "sigmoid": jax.nn.sigmoid}[activation]
    for w, b in params:
        x = act(x @ w + b)
    return x


if __name__ == "__main__":
    key = jax.random.PRNGKey(0)
    key, xk, xk2 = jax.random.split(key, 3)

    batch, input_dim = 8, 32
    hidden_dims = (128, 128)

    mlp = MLPPallas(input_dim, hidden_dims=hidden_dims, activation="tanh",
                    key=key)

    # Small batch: single fused tile (whole MLP in one pallas_call).
    x = jax.random.normal(xk, (batch, input_dim), jnp.float32)
    out = jax.block_until_ready(mlp(x))
    ref = _reference_forward(x, mlp.params, "tanh")
    assert out.shape == (batch, hidden_dims[-1])
    assert jnp.allclose(out, ref, atol=1e-5, rtol=1e-5)

    # Larger batch: exercises a multi-step "parallel" grid with a padded
    # final batch tile (272 = 256 + 16).
    x2 = jax.random.normal(xk2, (272, input_dim), jnp.float32)
    out2 = jax.block_until_ready(mlp(x2))
    ref2 = _reference_forward(x2, mlp.params, "tanh")
    assert jnp.allclose(out2, ref2, atol=1e-5, rtol=1e-5)

    # Fallback M/N/K-tiled path (used automatically for layers too large to
    # keep fully VMEM-resident) — validated here at small shapes.
    out3 = jax.block_until_ready(
        mlp_forward(x, mlp.params, "tanh", force_tiled=True))
    assert jnp.allclose(out3, ref, atol=1e-5, rtol=1e-5)

    print("KERNEL_OK")
</pallas_src>

<mosaic_0001>
module attributes {stable_mosaic.version = 11 : i64} {
  func.func @_mlp_fused_kernel(%arg0: i32, %arg1: memref<8x32xf32, #tpu.memory_space<vmem>>, %arg2: memref<32x128xf32, #tpu.memory_space<vmem>>, %arg3: memref<128x128xf32, #tpu.memory_space<vmem>>, %arg4: memref<1x128xf32, #tpu.memory_space<vmem>>, %arg5: memref<1x128xf32, #tpu.memory_space<vmem>>, %arg6: memref<8x128xf32, #tpu.memory_space<vmem>>) attributes {dimension_semantics = [#tpu.dimension_semantics<parallel>], iteration_bounds = array<i64: 1>, scalar_prefetch = 0 : i64, scratch_operands = 0 : i64, tpu.core_type = #tpu.core_type<tc>, window_params = [{transform_indices = @transform_0, window_bounds = array<i64: 8, 32>}, {pipeline_mode = #tpu.pipeline_mode<synchronous>, transform_indices = @transform_1, window_bounds = array<i64: 32, 128>}, {pipeline_mode = #tpu.pipeline_mode<synchronous>, transform_indices = @transform_2, window_bounds = array<i64: 128, 128>}, {pipeline_mode = #tpu.pipeline_mode<synchronous>, transform_indices = @transform_3, window_bounds = array<i64: 1, 128>}, {pipeline_mode = #tpu.pipeline_mode<synchronous>, transform_indices = @transform_4, window_bounds = array<i64: 1, 128>}, {transform_indices = @transform_5, window_bounds = array<i64: 8, 128>}]} {
    %c0 = arith.constant 0 : index
    %c0_0 = arith.constant 0 : index
    %0 = vector.load %arg1[%c0, %c0_0] : memref<8x32xf32, #tpu.memory_space<vmem>>, vector<8x32xf32>
    %c0_1 = arith.constant 0 : index
    %c0_2 = arith.constant 0 : index
    %1 = vector.load %arg2[%c0_1, %c0_2] : memref<32x128xf32, #tpu.memory_space<vmem>>, vector<32x128xf32>
    %cst = arith.constant dense<0.000000e+00> : vector<8x128xf32>
    %2 = tpu.matmul %0, %1, %cst {dimension_numbers = #tpu.dot_dimension_numbers<[1], [0], [0], [1], [0, 0, 1, 1], [], []>} : vector<8x32xf32>, vector<32x128xf32>, vector<8x128xf32> -> vector<8x128xf32>
    %c0_3 = arith.constant 0 : index
    %c0_4 = arith.constant 0 : index
    %3 = vector.load %arg4[%c0_3, %c0_4] : memref<1x128xf32, #tpu.memory_space<vmem>>, vector<1x128xf32>
    %4 = vector.broadcast %3 : vector<1x128xf32> to vector<8x128xf32>
    %5 = arith.addf %2, %4 : vector<8x128xf32>
    %6 = math.tanh %5 : vector<8x128xf32>
    %c0_5 = arith.constant 0 : index
    %c0_6 = arith.constant 0 : index
    %7 = vector.load %arg3[%c0_5, %c0_6] : memref<128x128xf32, #tpu.memory_space<vmem>>, vector<128x128xf32>
    %cst_7 = arith.constant dense<0.000000e+00> : vector<8x128xf32>
    %8 = tpu.matmul %6, %7, %cst_7 {dimension_numbers = #tpu.dot_dimension_numbers<[1], [0], [0], [1], [0, 0, 1, 1], [], []>} : vector<8x128xf32>, vector<128x128xf32>, vector<8x128xf32> -> vector<8x128xf32>
    %c0_8 = arith.constant 0 : index
    %c0_9 = arith.constant 0 : index
    %9 = vector.load %arg5[%c0_8, %c0_9] : memref<1x128xf32, #tpu.memory_space<vmem>>, vector<1x128xf32>
    %10 = vector.broadcast %9 : vector<1x128xf32> to vector<8x128xf32>
    %11 = arith.addf %8, %10 : vector<8x128xf32>
    %12 = math.tanh %11 : vector<8x128xf32>
    %c0_10 = arith.constant 0 : index
    %c0_11 = arith.constant 0 : index
    %13 = vector.load %arg6[%c0_10, %c0_11] : memref<8x128xf32, #tpu.memory_space<vmem>>, vector<8x128xf32>
    tpu.vector_store %arg6[%c0_10, %c0_11], %12 {strides = array<i32>} : memref<8x128xf32, #tpu.memory_space<vmem>>, vector<8x128xf32>,
    return
  }
  func.func @transform_0(%arg0: i32) -> (i32, i32) {
    %c0_i32 = arith.constant 0 : i32
    %c0_i32_0 = arith.constant 0 : i32
    return %arg0, %c0_i32 : i32, i32
  }
  func.func @transform_1(%arg0: i32) -> (i32, i32) {
    %c0_i32 = arith.constant 0 : i32
    %c0_i32_0 = arith.constant 0 : i32
    %c0_i32_1 = arith.constant 0 : i32
    return %c0_i32, %c0_i32_0 : i32, i32
  }
  func.func @transform_2(%arg0: i32) -> (i32, i32) {
    %c0_i32 = arith.constant 0 : i32
    %c0_i32_0 = arith.constant 0 : i32
    %c0_i32_1 = arith.constant 0 : i32
    return %c0_i32, %c0_i32_0 : i32, i32
  }
  func.func @transform_3(%arg0: i32) -> (i32, i32) {
    %c0_i32 = arith.constant 0 : i32
    %c0_i32_0 = arith.constant 0 : i32
    %c0_i32_1 = arith.constant 0 : i32
    return %c0_i32, %c0_i32_0 : i32, i32
  }
  func.func @transform_4(%arg0: i32) -> (i32, i32) {
    %c0_i32 = arith.constant 0 : i32
    %c0_i32_0 = arith.constant 0 : i32
    %c0_i32_1 = arith.constant 0 : i32
    return %c0_i32, %c0_i32_0 : i32, i32
  }
  func.func @transform_5(%arg0: i32) -> (i32, i32) {
    %c0_i32 = arith.constant 0 : i32
    %c0_i32_0 = arith.constant 0 : i32
    return %arg0, %c0_i32 : i32, i32
  }
}

</mosaic_0001>

<llo_original>
// kernel: tpu_custom_call.1
$region0: #{tpu_custom_call.1}
  #allocation0 [shape = 'u32[]', space=smem, size = 0x4, offset = 0x4, fixed_abs, tag = 'smem constant byte address 0x4 - core index']
  #allocation1 [shape = 'u32[72,128]{1,0:T(1,128)}', space=vmem, size = 0x9000, scoped, tag = 'internal scratch']
  %s0 = inlined_call_operand.hbm [shape: f32[8,32], index: 0, kind: input, shape index: {}]
  %s1 = inlined_call_operand.hbm [shape: f32[32,128], index: 1, kind: input, shape index: {}]
  %s2 = inlined_call_operand.hbm [shape: f32[128,128], index: 2, kind: input, shape index: {}]
  %s3 = inlined_call_operand.vmem [shape: f32[1,128], index: 3, kind: input, shape index: {}]
  %s4 = inlined_call_operand.vmem [shape: f32[1,128], index: 4, kind: input, shape index: {}]
  %s5 = inlined_call_operand.hbm [shape: f32[8,128], index: 5, kind: output, shape index: {}]
  %s6 = sld [smem:[#allocation0]]
  $region42: #{tpu_custom_call.1} parent=0
    _
  %s8 = ssub.s32 1, %s6
  %s9 = scalar_select 0, %s8, %s6
  $region1: #{tpu_custom_call.1} parent=0
    #allocation2 [shape = 'u8[4096]{0}', space=vmem, size = 0x1000, scoped, tag = 'input window, operand 0, single buffered']
    #allocation3 [shape = 's32[1]{0}', space=sflag, size = 0x4, scoped, tag = 'scoped memory for tpu_custom_call.1']
    #allocation4 [shape = 's32[1]{0}', space=sflag, size = 0x4, scoped, tag = 'scoped memory for tpu_custom_call.1']
    #allocation5 [shape = 'u8[16384]{0}', space=vmem, size = 0x4000, scoped, tag = 'input window, operand 1, single buffered']
    #allocation6 [shape = 's32[1]{0}', space=sflag, size = 0x4, scoped, tag = 'scoped memory for tpu_custom_call.1']
    #allocation7 [shape = 'u8[65536]{0}', space=vmem, size = 0x10000, scoped, tag = 'input window, operand 2, single buffered']
    #allocation8 [shape = 'u8[4096]{0}', space=vmem, size = 0x1000, scoped, tag = 'output window, operand 0, single buffered']
    %10 = vsyncpa [#allocation3], 0
    %11 = vsyncpa [#allocation6], 0
    %12 = vsyncpa [#allocation4], 0
    // Predicated region
    $region2: #{tpu_custom_call.1} parent=1 // pred_check
      _
    $region3: #{tpu_custom_call.1} parent=1 // pred_check_branch
      %14 = sbr.rel (0) target = $region5
    $region4: #{tpu_custom_call.1} parent=1 // pred_region
      %16 = vsyncadd [#allocation3], 0
      %s18 = sshll.u32 %s0, 4
      %s19 = int_to_ptr.hbm [resolvable:$true] %s18
      %s20 = sshll.u32 [#allocation2], 4
      %s21 = int_to_ptr.vmem [resolvable:$true] %s20
      %23 = dma.hbm_to_vmem [thread:$0]  %s19, 128, %s21, [#allocation3]
    $region5: #{tpu_custom_call.1} parent=1 // pred_fallthru
      _
    // Predicated region
    $region6: #{tpu_custom_call.1} parent=1 // pred_check
      _
    $region7: #{tpu_custom_call.1} parent=1 // pred_check_branch
      %25 = sbr.rel (0) target = $region9
    $region8: #{tpu_custom_call.1} parent=1 // pred_region
      %27 = vsyncadd [#allocation6], 0
      %s28 = sshll.u32 %s1, 4
      %s29 = int_to_ptr.hbm [resolvable:$true] %s28
      %s30 = sshll.u32 [#allocation5], 4
      %s31 = int_to_ptr.vmem [resolvable:$true] %s30
      %36 = dma.hbm_to_vmem [thread:$0]  %s29, 512, %s31, [#allocation6], 128, 128, 8
    $region9: #{tpu_custom_call.1} parent=1 // pred_fallthru
      _
    // Predicated region
    $region10: #{tpu_custom_call.1} parent=1 // pred_check
      _
    $region11: #{tpu_custom_call.1} parent=1 // pred_check_branch
      %38 = sbr.rel (0) target = $region13
    $region12: #{tpu_custom_call.1} parent=1 // pred_region
      %40 = vsyncadd [#allocation6], 0
      %s41 = sshll.u32 %s2, 4
      %s42 = int_to_ptr.hbm [resolvable:$true] %s41
      %s43 = sshll.u32 [#allocation7], 4
      %s44 = int_to_ptr.vmem [resolvable:$true] %s43
      %49 = dma.hbm_to_vmem [thread:$0]  %s42, 2048, %s44, [#allocation6], 128, 128, 8
    $region13: #{tpu_custom_call.1} parent=1 // pred_fallthru
      _
    // Predicated region
    $region14: #{tpu_custom_call.1} parent=1 // pred_check
      _
    $region15: #{tpu_custom_call.1} parent=1 // pred_check_branch
      %51 = sbr.rel (0) target = $region17
    $region16: #{tpu_custom_call.1} parent=1 // pred_region
      _
    $region17: #{tpu_custom_call.1} parent=1 // pred_fallthru
      _
    // Predicated region
    $region18: #{tpu_custom_call.1} parent=1 // pred_check
      _
    $region19: #{tpu_custom_call.1} parent=1 // pred_check_branch
      %53 = sbr.rel (0) target = $region21
    $region20: #{tpu_custom_call.1} parent=1 // pred_region
      _
    $region21: #{tpu_custom_call.1} parent=1 // pred_fallthru
      _
    // Predicated region
    $region22: #{tpu_custom_call.1} parent=1 // pred_check
      _
    $region23: #{tpu_custom_call.1} parent=1 // pred_check_branch
      %55 = sbr.rel (0) target = $region25
    $region24: #{tpu_custom_call.1} parent=1 // pred_region
      %57 = dma.done [#allocation3], 128
    $region25: #{tpu_custom_call.1} parent=1 // pred_fallthru
      _
    // Predicated region
    $region26: #{tpu_custom_call.1} parent=1 // pred_check
      _
    $region27: #{tpu_custom_call.1} parent=1 // pred_check_branch
      %59 = sbr.rel (0) target = $region29
    $region28: #{tpu_custom_call.1} parent=1 // pred_region
      %61 = dma.done [#allocation6], 512
    $region29: #{tpu_custom_call.1} parent=1 // pred_fallthru
      _
    // Predicated region
    $region30: #{tpu_custom_call.1} parent=1 // pred_check
      _
    $region31: #{tpu_custom_call.1} parent=1 // pred_check_branch
      %63 = sbr.rel (0) target = $region33
    $region32: #{tpu_custom_call.1} parent=1 // pred_region
      %65 = dma.done [#allocation6], 2048
    $region33: #{tpu_custom_call.1} parent=1 // pred_fallthru
      _
    %v66 = vld [vmem:[#allocation2] sm:$0xff]
    %v67 = vld [vmem:[#allocation5] sm:$0xff]
    %v68 = vld [vmem:[#allocation5 + $0x8] sm:$0xff]
    %v69 = vld [vmem:[#allocation5 + $0x10] sm:$0xff]
    %v70 = vld [vmem:[#allocation5 + $0x18] sm:$0xff]
    %v71 = vld [vmem:[%s3] sm:$0x1]
    %v73 = vperm.slane %v71, 0
    %vm75 = vcmask 261120
    %v77 = vsel %vm75, %v66, 0
    %79 = vmatpush.msra.mxu0 0.0
    %80 = vmatpush.msra.mxu0 0.0
    %81 = vmatpush.msra.mxu0 0.0
    %82 = vmatpush.msra.mxu0 0.0
    %83 = vmatpush.msra.mxu0 0.0
    %84 = vmatpush.msra.mxu0 0.0
    %85 = vmatpush.msra.mxu0 0.0
    %86 = vmatpush.msra.mxu0 0.0
    %87 = vmatpush.msra.mxu0 0.0
    %88 = vmatpush.msra.mxu0 0.0
    %89 = vmatpush.msra.mxu0 0.0
    %90 = vmatpush.msra.mxu0 0.0
    %91 = vmatpush.msra.mxu0 %v70
    %92 = vmatpush.msra.mxu0 %v69
    %93 = vmatpush.msra.mxu0 %v68
    %94 = vmatpush.msra.mxu0 %v67
    %95 = vmatmul.f32.gmra.mxu0 %v77
    %v96 = vpop.f32.mrf.mxu0
    %v97 = vadd.f32 %v73, %v96
    %98 = vdwg.mxu0
    %v99 = vtanh.pop %v97
    %v100 = vld [vmem:[#allocation7] sm:$0xff]
    %v101 = vld [vmem:[#allocation7 + $0x8] sm:$0xff]
    %v102 = vld [vmem:[#allocation7 + $0x10] sm:$0xff]
    %v103 = vld [vmem:[#allocation7 + $0x18] sm:$0xff]
    %v104 = vld [vmem:[#allocation7 + $0x20] sm:$0xff]
    %v105 = vld [vmem:[#allocation7 + $0x28] sm:$0xff]
    %v106 = vld [vmem:[#allocation7 + $0x30] sm:$0xff]
    %v107 = vld [vmem:[#allocation7 + $0x38] sm:$0xff]
    %v108 = vld [vmem:[#allocation7 + $0x40] sm:$0xff]
    %v109 = vld [vmem:[#allocation7 + $0x48] sm:$0xff]
    %v110 = vld [vmem:[#allocation7 + $0x50] sm:$0xff]
    %v111 = vld [vmem:[#allocation7 + $0x58] sm:$0xff]
    %v112 = vld [vmem:[#allocation7 + $0x60] sm:$0xff]
    %v113 = vld [vmem:[#allocation7 + $0x68] sm:$0xff]
    %v114 = vld [vmem:[#allocation7 + $0x70] sm:$0xff]
    %v115 = vld [vmem:[#allocation7 + $0x78] sm:$0xff]
    %v116 = vld [vmem:[%s4] sm:$0x1]
    %v118 = vperm.slane %v116, 0
    %120 = vmatpush.msra.mxu0 %v115
    %121 = vmatpush.msra.mxu0 %v114
    %122 = vmatpush.msra.mxu0 %v113
    %123 = vmatpush.msra.mxu0 %v112
    %124 = vmatpush.msra.mxu0 %v111
    %125 = vmatpush.msra.mxu0 %v110
    %126 = vmatpush.msra.mxu0 %v109
    %127 = vmatpush.msra.mxu0 %v108
    %128 = vmatpush.msra.mxu0 %v107
    %129 = vmatpush.msra.mxu0 %v106
    %130 = vmatpush.msra.mxu0 %v105
    %131 = vmatpush.msra.mxu0 %v104
    %132 = vmatpush.msra.mxu0 %v103
    %133 = vmatpush.msra.mxu0 %v102
    %134 = vmatpush.msra.mxu0 %v101
    %135 = vmatpush.msra.mxu0 %v100
    %136 = vmatmul.f32.gmra.mxu0 %v99
    %v137 = vpop.f32.mrf.mxu0
    %v138 = vadd.f32 %v118, %v137
    %139 = vdwg.mxu0
    %v140 = vtanh.pop %v138
    %141 = vst [vmem:[#allocation8] sm:$0xff] %v140
    // Predicated region
    $region34: #{tpu_custom_call.1} parent=1 // pred_check
      _
    $region35: #{tpu_custom_call.1} parent=1 // pred_check_branch
      %143 = sbr.rel (0) target = $region37
    $region36: #{tpu_custom_call.1} parent=1 // pred_region
      %145 = vsyncadd [#allocation4], 0
      %s147 = sshll.u32 [#allocation8], 4
      %s148 = int_to_ptr.vmem [resolvable:$true] %s147
      %s149 = sshll.u32 %s5, 4
      %s150 = int_to_ptr.hbm [resolvable:$true] %s149
      %152 = dma.vmem_to_hbm [thread:$0]  %s148, 128, %s150, [#allocation4]
    $region37: #{tpu_custom_call.1} parent=1 // pred_fallthru
      _
    // Predicated region
    $region38: #{tpu_custom_call.1} parent=1 // pred_check
      _
    $region39: #{tpu_custom_call.1} parent=1 // pred_check_branch
      %154 = sbr.rel (0) target = $region41
    $region40: #{tpu_custom_call.1} parent=1 // pred_region
      %156 = dma.done [#allocation4], 128
    $region41: #{tpu_custom_call.1} parent=1 // pred_fallthru
      _
    %157 = vsyncpa [#allocation3], 1
    %158 = vsyncpa [#allocation6], 1
    %159 = vsyncpa [#allocation4], 1

</llo_original>
